<compile_context>
chip_gen: v7x
topology: tpu7x:2x2x1
jax: 0.10.0
libtpu: 0.0.40
codegen_flags: <defaults>
</compile_context>

<pallas_src>
import functools

import jax
import jax.numpy as jnp
from jax.experimental import pallas as pl
from jax.experimental.pallas import tpu as pltpu


def _pruned_conv3x3_kernel(x_ref, w_ref, o_ref, xpad_ref, *,
                           H, W, Cin, Cout, lpad):
    # x_ref:    (1, Cin, H*W)          flattened NCHW tile (one batch element)
    # w_ref:    (3, 3, Cout, Cin)      pre-gathered per-tap weights
    # o_ref:    (1, Cout, H*W)         channel-major, lane-dense output
    # xpad_ref: (Cin, lpad + H*W + R)  flat zero-halo scratch (lpad % 128 == 0)
    HW = H * W

    # Build the flat zero-halo'd input in VMEM. Interior store is lane-aligned
    # (lpad is a multiple of 128) -> unmasked stores; the zero fill is a few
    # vector stores.
    xpad_ref[...] = jnp.zeros_like(xpad_ref)
    xpad_ref[:, lpad:lpad + HW] = x_ref[0]

    # Column (w) coordinate of every output pixel; used to zero taps that
    # would otherwise read a pixel from the adjacent image row.
    lane = jax.lax.broadcasted_iota(jnp.int32, (Cin, HW), 1)
    if W & (W - 1) == 0:
        col = lane & (W - 1)
    else:
        col = lane % W
    left_ok = col >= 1          # tap reads x[., w-1]
    right_ok = col <= W - 2     # tap reads x[., w+1]

    acc = jnp.zeros((Cout, HW), dtype=jnp.float32)
    for kh in range(3):
        for kw in range(3):
            dh, dw = kh - 1, kw - 1
            start = lpad + dh * W + dw
            slab = xpad_ref[:, start:start + HW]           # (Cin, H*W)
            if dw == -1:
                slab = jnp.where(left_ok, slab, 0.0)
            elif dw == 1:
                slab = jnp.where(right_ok, slab, 0.0)
            acc = acc + jnp.dot(w_ref[kh, kw], slab,
                                preferred_element_type=jnp.float32)

    # Channel-major, lane-dense (H*W on lanes) -> unmasked stores; the wrapper
    # reshape back to NCHW is a free contiguous reshape.
    o_ref[0] = acc.astype(o_ref.dtype)


def pruned_conv_forward(x_nchw, centroids_oihw, cluster_mapping):
    """x_nchw: (N, Cin, H, W); centroids_oihw: (Ccent, Cin, 3, 3)."""
    N, Cin, H, W = x_nchw.shape
    mapping = jnp.asarray(cluster_mapping, dtype=jnp.int32)
    Cout = int(mapping.shape[0])
    HW = H * W

    # Fuse the channel gather into the (tiny) weights at trace time and put
    # them in per-tap (Cout, Cin) order.
    w_gathered = jnp.take(centroids_oihw, mapping, axis=0)     # (Cout, Cin, 3, 3)
    w_taps = jnp.transpose(w_gathered, (2, 3, 0, 1))           # (3, 3, Cout, Cin)

    # Contiguous reshape -> free; no transpose / padding pass over x in HBM.
    x_flat = x_nchw.reshape(N, Cin, HW)

    # Left halo rounded up to a lane tile so the interior scratch store is
    # aligned; halo only needs W+1 zeros on each side of the flat image.
    lpad = ((W + 1 + 127) // 128) * 128
    pad_len = 2 * lpad + HW

    kernel = functools.partial(_pruned_conv3x3_kernel,
                               H=H, W=W, Cin=Cin, Cout=Cout, lpad=lpad)

    y = pl.pallas_call(
        kernel,
        out_shape=jax.ShapeDtypeStruct((N, Cout, HW), x_nchw.dtype),
        grid_spec=pltpu.PrefetchScalarGridSpec(
            num_scalar_prefetch=0,
            grid=(N,),
            in_specs=[
                pl.BlockSpec((1, Cin, HW), lambda n: (n, 0, 0)),
                pl.BlockSpec((3, 3, Cout, Cin), lambda n: (0, 0, 0, 0)),
            ],
            out_specs=pl.BlockSpec((1, Cout, HW), lambda n: (n, 0, 0)),
            scratch_shapes=[pltpu.VMEM((Cin, pad_len), x_nchw.dtype)],
        ),
        compiler_params=pltpu.CompilerParams(
            dimension_semantics=("parallel",)),
    )(x_flat, w_taps)

    # Contiguous split of the last dim: free reshape to the NCHW output.
    return y.reshape(N, Cout, H, W)


if __name__ == "__main__":
    key = jax.random.PRNGKey(0)
    k_x, k_w = jax.random.split(key)

    # Small deterministic setup consistent with the module's __init__.
    N, Cin, H, W = 2, 4, 16, 16
    n_centroids = 6
    cluster_mapping = [0, 2, 1, 5, 3, 0, 4, 2]   # out channels = 8

    x = jax.random.normal(k_x, (N, Cin, H, W), dtype=jnp.float32)
    centroids = jax.random.normal(
        k_w, (n_centroids, Cin, 3, 3), dtype=jnp.float32) * 0.1

    out = pruned_conv_forward(x, centroids, cluster_mapping)
    out = jax.block_until_ready(out)

    # Silent correctness check against XLA's conv (same semantics as PyTorch).
    ref = jax.lax.conv_general_dilated(
        x, centroids, window_strides=(1, 1), padding=((1, 1), (1, 1)),
        dimension_numbers=("NCHW", "OIHW", "NCHW"),
        precision=jax.lax.Precision.HIGHEST)
    ref = jnp.take(ref, jnp.asarray(cluster_mapping, jnp.int32), axis=1)
    assert out.shape == (N, len(cluster_mapping), H, W)
    assert jnp.allclose(out, ref, atol=1e-4, rtol=1e-4)

    print("KERNEL_OK")
</pallas_src>

<mosaic_0001>
module attributes {stable_mosaic.version = 11 : i64} {
  func.func @_pruned_conv3x3_kernel(%arg0: i32, %arg1: memref<1x4x256xf32, #tpu.memory_space<vmem>>, %arg2: memref<3x3x8x4xf32, #tpu.memory_space<vmem>>, %arg3: memref<1x8x256xf32, #tpu.memory_space<vmem>>, %arg4: memref<4x512xf32, #tpu.memory_space<vmem>>) attributes {dimension_semantics = [#tpu.dimension_semantics<parallel>], iteration_bounds = array<i64: 2>, scalar_prefetch = 0 : i64, scratch_operands = 1 : i64, tpu.core_type = #tpu.core_type<tc>, window_params = [{transform_indices = @transform_0, window_bounds = array<i64: 1, 4, 256>}, {pipeline_mode = #tpu.pipeline_mode<synchronous>, transform_indices = @transform_1, window_bounds = array<i64: 3, 3, 8, 4>}, {transform_indices = @transform_2, window_bounds = array<i64: 1, 8, 256>}]} {
    %cst = arith.constant 0.000000e+00 : f32
    %0 = vector.broadcast %cst : f32 to vector<4x512xf32>
    %c0 = arith.constant 0 : index
    %c0_0 = arith.constant 0 : index
    %1 = vector.load %arg4[%c0, %c0_0] : memref<4x512xf32, #tpu.memory_space<vmem>>, vector<4x512xf32>
    tpu.vector_store %arg4[%c0, %c0_0], %0 {strides = array<i32>} : memref<4x512xf32, #tpu.memory_space<vmem>>, vector<4x512xf32>,
    %c0_1 = arith.constant 0 : index
    %c0_2 = arith.constant 0 : index
    %c0_3 = arith.constant 0 : index
    %2 = vector.load %arg1[%c0_1, %c0_2, %c0_3] : memref<1x4x256xf32, #tpu.memory_space<vmem>>, vector<1x4x256xf32>
    %3 = vector.shape_cast %2 : vector<1x4x256xf32> to vector<4x256xf32>
    %c0_4 = arith.constant 0 : index
    %c128 = arith.constant 128 : index
    %4 = vector.load %arg4[%c0_4, %c128] : memref<4x512xf32, #tpu.memory_space<vmem>>, vector<4x256xf32>
    tpu.vector_store %arg4[%c0_4, %c128], %3 {strides = array<i32>} : memref<4x512xf32, #tpu.memory_space<vmem>>, vector<4x256xf32>,
    %5 = tpu.iota {dimensions = array<i32: 1>} : vector<4x256xi32>
    %c15_i32 = arith.constant 15 : i32
    %6 = vector.broadcast %c15_i32 : i32 to vector<4x256xi32>
    %7 = arith.andi %5, %6 : vector<4x256xi32>
    %c1_i32 = arith.constant 1 : i32
    %8 = vector.broadcast %c1_i32 : i32 to vector<4x256xi32>
    %9 = arith.cmpi sge, %7, %8 : vector<4x256xi32>
    %c14_i32 = arith.constant 14 : i32
    %10 = vector.broadcast %c14_i32 : i32 to vector<4x256xi32>
    %11 = arith.cmpi sle, %7, %10 : vector<4x256xi32>
    %cst_5 = arith.constant 0.000000e+00 : f32
    %12 = vector.broadcast %cst_5 : f32 to vector<8x256xf32>
    %c0_6 = arith.constant 0 : index
    %c111 = arith.constant 111 : index
    %13 = vector.load %arg4[%c0_6, %c111] : memref<4x512xf32, #tpu.memory_space<vmem>>, vector<4x256xf32>
    %cst_7 = arith.constant 0.000000e+00 : f32
    %14 = vector.broadcast %cst_7 : f32 to vector<4x256xf32>
    %15 = arith.select %9, %13, %14 : vector<4x256xi1>, vector<4x256xf32>
    %c0_8 = arith.constant 0 : index
    %c0_9 = arith.constant 0 : index
    %c0_10 = arith.constant 0 : index
    %c0_11 = arith.constant 0 : index
    %16 = vector.load %arg2[%c0_8, %c0_9, %c0_10, %c0_11] : memref<3x3x8x4xf32, #tpu.memory_space<vmem>>, vector<1x1x8x4xf32>
    %17 = vector.shape_cast %16 : vector<1x1x8x4xf32> to vector<8x4xf32>
    %cst_12 = arith.constant dense<0.000000e+00> : vector<8x256xf32>
    %18 = tpu.matmul %17, %15, %cst_12 {dimension_numbers = #tpu.dot_dimension_numbers<[1], [0], [0], [1], [0, 0, 1, 1], [], []>} : vector<8x4xf32>, vector<4x256xf32>, vector<8x256xf32> -> vector<8x256xf32>
    %19 = arith.addf %12, %18 : vector<8x256xf32>
    %c0_13 = arith.constant 0 : index
    %c112 = arith.constant 112 : index
    %20 = vector.load %arg4[%c0_13, %c112] : memref<4x512xf32, #tpu.memory_space<vmem>>, vector<4x256xf32>
    %c0_14 = arith.constant 0 : index
    %c1 = arith.constant 1 : index
    %c0_15 = arith.constant 0 : index
    %c0_16 = arith.constant 0 : index
    %21 = vector.load %arg2[%c0_14, %c1, %c0_15, %c0_16] : memref<3x3x8x4xf32, #tpu.memory_space<vmem>>, vector<1x1x8x4xf32>
    %22 = vector.shape_cast %21 : vector<1x1x8x4xf32> to vector<8x4xf32>
    %cst_17 = arith.constant dense<0.000000e+00> : vector<8x256xf32>
    %23 = tpu.matmul %22, %20, %cst_17 {dimension_numbers = #tpu.dot_dimension_numbers<[1], [0], [0], [1], [0, 0, 1, 1], [], []>} : vector<8x4xf32>, vector<4x256xf32>, vector<8x256xf32> -> vector<8x256xf32>
    %24 = arith.addf %19, %23 : vector<8x256xf32>
    %c0_18 = arith.constant 0 : index
    %c113 = arith.constant 113 : index
    %25 = vector.load %arg4[%c0_18, %c113] : memref<4x512xf32, #tpu.memory_space<vmem>>, vector<4x256xf32>
    %cst_19 = arith.constant 0.000000e+00 : f32
    %26 = vector.broadcast %cst_19 : f32 to vector<4x256xf32>
    %27 = arith.select %11, %25, %26 : vector<4x256xi1>, vector<4x256xf32>
    %c0_20 = arith.constant 0 : index
    %c2 = arith.constant 2 : index
    %c0_21 = arith.constant 0 : index
    %c0_22 = arith.constant 0 : index
    %28 = vector.load %arg2[%c0_20, %c2, %c0_21, %c0_22] : memref<3x3x8x4xf32, #tpu.memory_space<vmem>>, vector<1x1x8x4xf32>
    %29 = vector.shape_cast %28 : vector<1x1x8x4xf32> to vector<8x4xf32>
    %cst_23 = arith.constant dense<0.000000e+00> : vector<8x256xf32>
    %30 = tpu.matmul %29, %27, %cst_23 {dimension_numbers = #tpu.dot_dimension_numbers<[1], [0], [0], [1], [0, 0, 1, 1], [], []>} : vector<8x4xf32>, vector<4x256xf32>, vector<8x256xf32> -> vector<8x256xf32>
    %31 = arith.addf %24, %30 : vector<8x256xf32>
    %c0_24 = arith.constant 0 : index
    %c127 = arith.constant 127 : index
    %32 = vector.load %arg4[%c0_24, %c127] : memref<4x512xf32, #tpu.memory_space<vmem>>, vector<4x256xf32>
    %cst_25 = arith.constant 0.000000e+00 : f32
    %33 = vector.broadcast %cst_25 : f32 to vector<4x256xf32>
    %34 = arith.select %9, %32, %33 : vector<4x256xi1>, vector<4x256xf32>
    %c1_26 = arith.constant 1 : index
    %c0_27 = arith.constant 0 : index
    %c0_28 = arith.constant 0 : index
    %c0_29 = arith.constant 0 : index
    %35 = vector.load %arg2[%c1_26, %c0_27, %c0_28, %c0_29] : memref<3x3x8x4xf32, #tpu.memory_space<vmem>>, vector<1x1x8x4xf32>
    %36 = vector.shape_cast %35 : vector<1x1x8x4xf32> to vector<8x4xf32>
    %cst_30 = arith.constant dense<0.000000e+00> : vector<8x256xf32>
    %37 = tpu.matmul %36, %34, %cst_30 {dimension_numbers = #tpu.dot_dimension_numbers<[1], [0], [0], [1], [0, 0, 1, 1], [], []>} : vector<8x4xf32>, vector<4x256xf32>, vector<8x256xf32> -> vector<8x256xf32>
    %38 = arith.addf %31, %37 : vector<8x256xf32>
    %c0_31 = arith.constant 0 : index
    %c128_32 = arith.constant 128 : index
    %39 = vector.load %arg4[%c0_31, %c128_32] : memref<4x512xf32, #tpu.memory_space<vmem>>, vector<4x256xf32>
    %c1_33 = arith.constant 1 : index
    %c1_34 = arith.constant 1 : index
    %c0_35 = arith.constant 0 : index
    %c0_36 = arith.constant 0 : index
    %40 = vector.load %arg2[%c1_33, %c1_34, %c0_35, %c0_36] : memref<3x3x8x4xf32, #tpu.memory_space<vmem>>, vector<1x1x8x4xf32>
    %41 = vector.shape_cast %40 : vector<1x1x8x4xf32> to vector<8x4xf32>
    %cst_37 = arith.constant dense<0.000000e+00> : vector<8x256xf32>
    %42 = tpu.matmul %41, %39, %cst_37 {dimension_numbers = #tpu.dot_dimension_numbers<[1], [0], [0], [1], [0, 0, 1, 1], [], []>} : vector<8x4xf32>, vector<4x256xf32>, vector<8x256xf32> -> vector<8x256xf32>
    %43 = arith.addf %38, %42 : vector<8x256xf32>
    %c0_38 = arith.constant 0 : index
    %c129 = arith.constant 129 : index
    %44 = vector.load %arg4[%c0_38, %c129] : memref<4x512xf32, #tpu.memory_space<vmem>>, vector<4x256xf32>
    %cst_39 = arith.constant 0.000000e+00 : f32
    %45 = vector.broadcast %cst_39 : f32 to vector<4x256xf32>
    %46 = arith.select %11, %44, %45 : vector<4x256xi1>, vector<4x256xf32>
    %c1_40 = arith.constant 1 : index
    %c2_41 = arith.constant 2 : index
    %c0_42 = arith.constant 0 : index
    %c0_43 = arith.constant 0 : index
    %47 = vector.load %arg2[%c1_40, %c2_41, %c0_42, %c0_43] : memref<3x3x8x4xf32, #tpu.memory_space<vmem>>, vector<1x1x8x4xf32>
    %48 = vector.shape_cast %47 : vector<1x1x8x4xf32> to vector<8x4xf32>
    %cst_44 = arith.constant dense<0.000000e+00> : vector<8x256xf32>
    %49 = tpu.matmul %48, %46, %cst_44 {dimension_numbers = #tpu.dot_dimension_numbers<[1], [0], [0], [1], [0, 0, 1, 1], [], []>} : vector<8x4xf32>, vector<4x256xf32>, vector<8x256xf32> -> vector<8x256xf32>
    %50 = arith.addf %43, %49 : vector<8x256xf32>
    %c0_45 = arith.constant 0 : index
    %c143 = arith.constant 143 : index
    %51 = vector.load %arg4[%c0_45, %c143] : memref<4x512xf32, #tpu.memory_space<vmem>>, vector<4x256xf32>
    %cst_46 = arith.constant 0.000000e+00 : f32
    %52 = vector.broadcast %cst_46 : f32 to vector<4x256xf32>
    %53 = arith.select %9, %51, %52 : vector<4x256xi1>, vector<4x256xf32>
    %c2_47 = arith.constant 2 : index
    %c0_48 = arith.constant 0 : index
    %c0_49 = arith.constant 0 : index
    %c0_50 = arith.constant 0 : index
    %54 = vector.load %arg2[%c2_47, %c0_48, %c0_49, %c0_50] : memref<3x3x8x4xf32, #tpu.memory_space<vmem>>, vector<1x1x8x4xf32>
    %55 = vector.shape_cast %54 : vector<1x1x8x4xf32> to vector<8x4xf32>
    %cst_51 = arith.constant dense<0.000000e+00> : vector<8x256xf32>
    %56 = tpu.matmul %55, %53, %cst_51 {dimension_numbers = #tpu.dot_dimension_numbers<[1], [0], [0], [1], [0, 0, 1, 1], [], []>} : vector<8x4xf32>, vector<4x256xf32>, vector<8x256xf32> -> vector<8x256xf32>
    %57 = arith.addf %50, %56 : vector<8x256xf32>
    %c0_52 = arith.constant 0 : index
    %c144 = arith.constant 144 : index
    %58 = vector.load %arg4[%c0_52, %c144] : memref<4x512xf32, #tpu.memory_space<vmem>>, vector<4x256xf32>
    %c2_53 = arith.constant 2 : index
    %c1_54 = arith.constant 1 : index
    %c0_55 = arith.constant 0 : index
    %c0_56 = arith.constant 0 : index
    %59 = vector.load %arg2[%c2_53, %c1_54, %c0_55, %c0_56] : memref<3x3x8x4xf32, #tpu.memory_space<vmem>>, vector<1x1x8x4xf32>
    %60 = vector.shape_cast %59 : vector<1x1x8x4xf32> to vector<8x4xf32>
    %cst_57 = arith.constant dense<0.000000e+00> : vector<8x256xf32>
    %61 = tpu.matmul %60, %58, %cst_57 {dimension_numbers = #tpu.dot_dimension_numbers<[1], [0], [0], [1], [0, 0, 1, 1], [], []>} : vector<8x4xf32>, vector<4x256xf32>, vector<8x256xf32> -> vector<8x256xf32>
    %62 = arith.addf %57, %61 : vector<8x256xf32>
    %c0_58 = arith.constant 0 : index
    %c145 = arith.constant 145 : index
    %63 = vector.load %arg4[%c0_58, %c145] : memref<4x512xf32, #tpu.memory_space<vmem>>, vector<4x256xf32>
    %cst_59 = arith.constant 0.000000e+00 : f32
    %64 = vector.broadcast %cst_59 : f32 to vector<4x256xf32>
    %65 = arith.select %11, %63, %64 : vector<4x256xi1>, vector<4x256xf32>
    %c2_60 = arith.constant 2 : index
    %c2_61 = arith.constant 2 : index
    %c0_62 = arith.constant 0 : index
    %c0_63 = arith.constant 0 : index
    %66 = vector.load %arg2[%c2_60, %c2_61, %c0_62, %c0_63] : memref<3x3x8x4xf32, #tpu.memory_space<vmem>>, vector<1x1x8x4xf32>
    %67 = vector.shape_cast %66 : vector<1x1x8x4xf32> to vector<8x4xf32>
    %cst_64 = arith.constant dense<0.000000e+00> : vector<8x256xf32>
    %68 = tpu.matmul %67, %65, %cst_64 {dimension_numbers = #tpu.dot_dimension_numbers<[1], [0], [0], [1], [0, 0, 1, 1], [], []>} : vector<8x4xf32>, vector<4x256xf32>, vector<8x256xf32> -> vector<8x256xf32>
    %69 = arith.addf %62, %68 : vector<8x256xf32>
    %c0_65 = arith.constant 0 : index
    %c0_66 = arith.constant 0 : index
    %c0_67 = arith.constant 0 : index
    %70 = vector.load %arg3[%c0_65, %c0_66, %c0_67] : memref<1x8x256xf32, #tpu.memory_space<vmem>>, vector<1x8x256xf32>
    %71 = vector.shape_cast %70 : vector<1x8x256xf32> to vector<8x256xf32>
    %72 = vector.shape_cast %69 : vector<8x256xf32> to vector<1x8x256xf32>
    tpu.vector_store %arg3[%c0_65, %c0_66, %c0_67], %72 {strides = array<i32>} : memref<1x8x256xf32, #tpu.memory_space<vmem>>, vector<1x8x256xf32>,
    return
  }
  func.func @transform_0(%arg0: i32) -> (i32, i32, i32) {
    %c0_i32 = arith.constant 0 : i32
    %c0_i32_0 = arith.constant 0 : i32
    %c0_i32_1 = arith.constant 0 : i32
    return %arg0, %c0_i32, %c0_i32_0 : i32, i32, i32
  }
  func.func @transform_1(%arg0: i32) -> (i32, i32, i32, i32) {
    %c0_i32 = arith.constant 0 : i32
    %c0_i32_0 = arith.constant 0 : i32
    %c0_i32_1 = arith.constant 0 : i32
    %c0_i32_2 = arith.constant 0 : i32
    %c0_i32_3 = arith.constant 0 : i32
    return %c0_i32, %c0_i32_0, %c0_i32_1, %c0_i32_2 : i32, i32, i32, i32
  }
  func.func @transform_2(%arg0: i32) -> (i32, i32, i32) {
    %c0_i32 = arith.constant 0 : i32
    %c0_i32_0 = arith.constant 0 : i32
    %c0_i32_1 = arith.constant 0 : i32
    return %arg0, %c0_i32, %c0_i32_0 : i32, i32, i32
  }
}

</mosaic_0001>

<llo_original>
// kernel: tpu_custom_call.1
$region0: #{tpu_custom_call.1}
  #allocation0 [shape = 'u32[]', space=smem, size = 0x4, offset = 0x4, fixed_abs, tag = 'smem constant byte address 0x4 - core index']
  #allocation1 [shape = 'u32[144,128]{1,0:T(1,128)}', space=vmem, size = 0x12000, scoped, tag = 'internal scratch']
  #allocation2 [shape = 'f32[4,512]{1,0:T(4,128)}', space=vmem, size = 0x2000, scoped, tag = 'scratch operand']
  %s0 = inlined_call_operand.vmem [shape: f32[2,4,256], index: 0, kind: input, shape index: {}]
  %s1 = inlined_call_operand.vmem [shape: f32[3,3,8,4], index: 1, kind: input, shape index: {}]
  %s2 = inlined_call_operand.hbm [shape: f32[2,8,256], index: 2, kind: output, shape index: {}]
  %s3 = sld [smem:[#allocation0]]
  $region41: #{tpu_custom_call.1} parent=0
    _
  %s5 = ssub.s32 1, %s3
  %s6 = scalar_select 0, %s5, %s3
  $region1: #{tpu_custom_call.1} parent=0
    #allocation3 [shape = 'u8[16384]{0}', space=vmem, size = 0x4000, scoped, tag = 'output window, operand 0']
    #allocation4 [shape = 's32[2]{0}', space=sflag, size = 0x8, scoped, tag = 'scoped memory for tpu_custom_call.1']
    %7 = vsyncpa [#allocation4], 0
    %s8 = scalar_lea.sflag [#allocation4], 1
    %9 = vsyncpa %s8, 0
    loop: start=0, step=1, limit=4
    $region2: #{tpu_custom_call.1} parent=1 // loop_pre_header
      _
    $region3: #{tpu_custom_call.1} parent=1 // loop_header
      %s11 = sphi 0, %s15
      %p12 = scmp.ge.s32.totalorder %s11, 4
      %s21 = sphi 0, %s23
      %s24 = sphi 0, %s21
      %s25 = sphi 0, %s24
      %s41 = sphi 0, %s25
      %s45 = sphi 0, %s45
      %s47 = sphi 0, %s45
      %s48 = sphi 0, %s47
      %s62 = sphi 0, %s48
      %s68 = sphi 0, %s70
      %s71 = sphi 0, %s68
      %s72 = sphi 0, %s71
      %s88 = sphi 0, %s72
    $region4: #{tpu_custom_call.1} parent=1 // loop_header_branch
      %14 = sbr.rel (%p12) target = $region8
    $region5: #{tpu_custom_call.1} parent=1 // loop_body
      %s16 = ssub.s32 %s11, 1
      %s17 = ssub.s32 %s11, 2
      %s18 = sadd.s32 %s11, 1
      %s19 = ssub.s32 %s11, %s18
      %p20 = scmp.eq.s32.totalorder %s19, 0
      %s22 = sadd.s32 %s21, 1
      %s23 = scalar_select %p20, %s21, %s22
      %p26 = pneg %p20
      %p27 = scmp.eq.s32.totalorder %s11, 1
      %p28 = por %p26, %p27
      %p29 = scmp.ne.s32.totalorder %s21, %s24
      %p30 = scmp.eq.s32.totalorder %s11, 0
      %p31 = por %p29, %p30
      %p32 = scmp.ne.s32.totalorder %s21, %s24
      %p33 = scmp.eq.s32.totalorder %s16, 1
      %p34 = por %p32, %p33
      %p35 = scmp.ne.s32.totalorder %s24, %s25
      %p36 = scmp.eq.s32.totalorder %s16, 0
      %p37 = por %p35, %p36
      %p38 = scmp.ne.s32.totalorder %s24, %s25
      %p39 = scmp.eq.s32.totalorder %s17, 1
      %p40 = por %p38, %p39
      %p42 = scmp.ne.s32.totalorder %s25, %s41
      %p43 = scmp.eq.s32.totalorder %s17, 0
      %p44 = por %p42, %p43
      %s46 = sadd.s32 %s45, 1
      %p49 = scmp.eq.s32.totalorder %s11, 1
      %p50 = scmp.ne.s32.totalorder %s45, %s47
      %p51 = scmp.eq.s32.totalorder %s11, 0
      %p52 = por %p50, %p51
      %p53 = scmp.ne.s32.totalorder %s45, %s47
      %p54 = scmp.eq.s32.totalorder %s16, 1
      %p55 = por %p53, %p54
      %p56 = scmp.ne.s32.totalorder %s47, %s48
      %p57 = scmp.eq.s32.totalorder %s16, 0
      %p58 = por %p56, %p57
      %p59 = scmp.ne.s32.totalorder %s47, %s48
      %p60 = scmp.eq.s32.totalorder %s17, 1
      %p61 = por %p59, %p60
      %p63 = scmp.ne.s32.totalorder %s48, %s62
      %p64 = scmp.eq.s32.totalorder %s17, 0
      %p65 = por %p63, %p64
      %s66 = ssub.s32 %s11, %s18
      %p67 = scmp.eq.s32.totalorder %s66, 0
      %s69 = sadd.s32 %s68, 1
      %s70 = scalar_select %p67, %s68, %s69
      %p73 = pneg %p67
      %p74 = scmp.eq.s32.totalorder %s11, 1
      %p75 = por %p73, %p74
      %p76 = scmp.ne.s32.totalorder %s68, %s71
      %p77 = scmp.eq.s32.totalorder %s11, 0
      %p78 = por %p76, %p77
      %p79 = scmp.ne.s32.totalorder %s68, %s71
      %p80 = scmp.eq.s32.totalorder %s16, 1
      %p81 = por %p79, %p80
      %p82 = scmp.ne.s32.totalorder %s71, %s72
      %p83 = scmp.eq.s32.totalorder %s16, 0
      %p84 = por %p82, %p83
      %p85 = scmp.ne.s32.totalorder %s71, %s72
      %p86 = scmp.eq.s32.totalorder %s17, 1
      %p87 = por %p85, %p86
      %p89 = scmp.ne.s32.totalorder %s72, %s88
      %p90 = scmp.eq.s32.totalorder %s17, 0
      %p91 = por %p89, %p90
      %p92 = scmp.le.s32.totalorder 1, %s11
      %p93 = scmp.lt.s32.totalorder %s11, 3
      %p94 = pnand %p92, %p93
      %p95 = pneg %p94
      // Predicated region
      $region9: #{tpu_custom_call.1} parent=5 // pred_check
        _
      $region10: #{tpu_custom_call.1} parent=5 // pred_check_branch
        %97 = sbr.rel (%p94) target = $region12
      $region11: #{tpu_custom_call.1} parent=5 // pred_region
        %s98 = ssub.s32 %s11, 1
        // Predicated region
        $region13: #{tpu_custom_call.1} parent=11 // pred_check
          %p99 = pneg %p58
        $region14: #{tpu_custom_call.1} parent=11 // pred_check_branch
          %101 = sbr.rel (%p99) target = $region16
        $region15: #{tpu_custom_call.1} parent=11 // pred_region
          _
        $region16: #{tpu_custom_call.1} parent=11 // pred_fallthru
          _
      $region12: #{tpu_custom_call.1} parent=5 // pred_fallthru
        _
      %p102 = scmp.lt.s32.totalorder %s11, 2
      // Predicated region
      $region17: #{tpu_custom_call.1} parent=5 // pred_check
        %p103 = pneg %p102
      $region18: #{tpu_custom_call.1} parent=5 // pred_check_branch
        %105 = sbr.rel (%p103) target = $region20
      $region19: #{tpu_custom_call.1} parent=5 // pred_region
        // Predicated region
        $region21: #{tpu_custom_call.1} parent=19 // pred_check
          %p106 = pneg %p31
        $region22: #{tpu_custom_call.1} parent=19 // pred_check_branch
          %108 = sbr.rel (%p106) target = $region24
        $region23: #{tpu_custom_call.1} parent=19 // pred_region
          %p109 = scmp.lt.s32.totalorder %s11, 1
          %s110 = scalar_select %p109, %s11, 1
          %s111 = smul.addr %s110, 2
          %s112 = smul.addr %s111, 4
          %s113 = scalar_lea.vmem %s0, %s112
        $region24: #{tpu_custom_call.1} parent=19 // pred_fallthru
          _
      $region20: #{tpu_custom_call.1} parent=5 // pred_fallthru
        _
      %p114 = scmp.le.s32.totalorder 1, %s11
      %p115 = scmp.lt.s32.totalorder %s11, 3
      %p116 = pnand %p114, %p115
      %p117 = pneg %p116
      // Predicated region
      $region25: #{tpu_custom_call.1} parent=5 // pred_check
        _
      $region26: #{tpu_custom_call.1} parent=5 // pred_check_branch
        %119 = sbr.rel (%p116) target = $region28
      $region27: #{tpu_custom_call.1} parent=5 // pred_region
        %s120 = ssub.s32 %s11, 1
        %p121 = scmp.lt.s32.totalorder %s16, 1
        %s122 = scalar_select %p121, %s16, 1
        %s123 = smul.addr %s122, 2
        %s124 = smul.addr %s123, 4
        %s125 = scalar_lea.vmem %s0, %s124
        %p126 = pneg %p37
        %p127 = pneg %p34
        %p128 = pneg %p58
        %p129 = pneg %p55
        %p130 = pneg %p84
        %p131 = pneg %p81
        %s132 = sand.u32 %s71, 1
        %s133 = scalar_lea.sflag [#allocation4], %s132
        %s134 = sand.u32 %s71, 1
        %s135 = smul.addr %s134, 16
        %s136 = scalar_lea.vmem [#allocation3], %s135
        %p137 = scmp.lt.s32.totalorder %s16, 1
        %s138 = scalar_select %p137, %s16, 1
        %s139 = smul.addr %s138, 2
        %s140 = smul.addr %s139, 4
        %s141 = scalar_lea.vmem %s0, %s140
        %142 = vst [vmem:[#allocation2] sm:$0xff] 0.0
        %143 = vst [vmem:[#allocation2 + $0x8] sm:$0xff] 0.0
        %v144 = vld [vmem:[%s141] sm:$0xff]
        %145 = vst [vmem:[#allocation2 + $0x4] sm:$0xff] %v144
        %v146 = vlaneseq
        %v147 = vand.u32 %v146, 127
        %v148 = vadd.s32 %v147, 128
        %v149 = vand.u32 %v147, 15
        %v150 = vand.u32 %v148, 15
        %vm151 = vcmp.ge.s32.totalorder %v149, 1
        %vm152 = vcmp.ge.s32.totalorder %v150, 1
        %vm153 = vcmp.le.s32.totalorder %v149, 14
        %vm154 = vcmp.le.s32.totalorder %v150, 14
        %v155 = vld [vmem:[#allocation2] sm:$0xff]
        %v156 = vld [vmem:[#allocation2 + $0x8] sm:$0xf]
        %v159 = vcombine.high %v155, %v155
        %160 = vrot.lane.b32.xlu0 %v155, 17
        %v161 = vpop.permute.xlu0 %160
        %162 = vrot.lane.b32.xlu0 %v159, 17
        %v163 = vpop.permute.xlu0 %162
        %164 = vrot.lane.b32.xlu0 %v156, 17
        %v165 = vpop.permute.xlu0 %164
        %vm166 = vcmask 138240
        %v167 = vsel %vm166, %v161, %v163
        %v168 = vsel %vm166, %v163, %v165
        %v171 = vsel %vm151, %v167, 0.0
        %v172 = vsel %vm152, %v168, 0.0
        %v173 = vld [vmem:[%s1] sm:$0xff]
        %s174 = scalar_lea.vmem %s1, 8
        %v175 = vld [vmem:[%s174] sm:$0xff]
        %176 = vrot.lane.b32.xlu0 %v155, 16
        %v177 = vpop.permute.xlu0 %176
        %178 = vrot.lane.b32.xlu0 %v159, 16
        %v179 = vpop.permute.xlu0 %178
        %180 = vrot.lane.b32.xlu0 %v156, 16
        %v181 = vpop.permute.xlu0 %180
        %vm182 = vcmask 130048
        %v183 = vsel %vm182, %v177, %v179
        %v184 = vsel %vm182, %v179, %v181
        %vm185 = vcmask 31744
        %v187 = vsel %vm185, %v175, 0
        %vm189 = vcmask 1043456
        %v190 = vsel %vm189, %v183, 0
        %v192 = vsel %vm189, %v184, 0
        %194 = vmatprep.subr.mxu0 %v192
        %195 = vmatpush1.msra.mxu0 %v190
        %196 = vmatprep.subr.mxu0 0.0
        %197 = vmatpush1.msra.mxu0 0.0
        %198 = vmatprep.subr.mxu0 0.0
        %199 = vmatpush1.msra.mxu0 0.0
        %200 = vmatprep.subr.mxu0 0.0
        %201 = vmatpush1.msra.mxu0 0.0
        %202 = vmatprep.subr.mxu0 0.0
        %203 = vmatpush1.msra.mxu0 0.0
        %204 = vmatprep.subr.mxu0 0.0
        %205 = vmatpush1.msra.mxu0 0.0
        %206 = vmatprep.subr.mxu0 0.0
        %207 = vmatpush1.msra.mxu0 0.0
        %208 = vmatprep.subr.mxu0 0.0
        %209 = vmatpush1.msra.mxu0 0.0
        %210 = vmatprep.subr.mxu0 0.0
        %211 = vmatpush1.msra.mxu0 0.0
        %212 = vmatprep.subr.mxu0 0.0
        %213 = vmatpush1.msra.mxu0 0.0
        %214 = vmatprep.subr.mxu0 0.0
        %215 = vmatpush1.msra.mxu0 0.0
        %216 = vmatprep.subr.mxu0 0.0
        %217 = vmatpush1.msra.mxu0 0.0
        %218 = vmatprep.subr.mxu0 0.0
        %219 = vmatpush1.msra.mxu0 0.0
        %220 = vmatprep.subr.mxu0 0.0
        %221 = vmatpush1.msra.mxu0 0.0
        %222 = vmatprep.subr.mxu0 0.0
        %223 = vmatpush1.msra.mxu0 0.0
        %224 = vmatprep.subr.mxu0 0.0
        %225 = vmatpush1.msra.mxu0 0.0
        %226 = vmatprep.subr.mxu0 0.0
        %227 = vmatpush1.msra.mxu0 0.0
        %228 = vmatprep.subr.mxu0 0.0
        %229 = vmatpush1.msra.mxu0 0.0
        %230 = vmatprep.subr.mxu0 0.0
        %231 = vmatpush1.msra.mxu0 0.0
        %232 = vmatprep.subr.mxu0 0.0
        %233 = vmatpush1.msra.mxu0 0.0
        %234 = vmatprep.subr.mxu0 0.0
        %235 = vmatpush1.msra.mxu0 0.0
        %236 = vmatprep.subr.mxu0 0.0
        %237 = vmatpush1.msra.mxu0 0.0
        %238 = vmatprep.subr.mxu0 0.0
        %239 = vmatpush1.msra.mxu0 0.0
        %240 = vmatprep.subr.mxu0 0.0
        %241 = vmatpush1.msra.mxu0 0.0
        %242 = vmatprep.subr.mxu0 0.0
        %243 = vmatpush1.msra.mxu0 0.0
        %244 = vmatprep.subr.mxu0 0.0
        %245 = vmatpush1.msra.mxu0 0.0
        %246 = vmatprep.subr.mxu0 0.0
        %247 = vmatpush1.msra.mxu0 0.0
        %248 = vmatprep.subr.mxu0 0.0
        %249 = vmatpush1.msra.mxu0 0.0
        %250 = vmatprep.subr.mxu0 0.0
        %251 = vmatpush1.msra.mxu0 0.0
        %252 = vmatprep.subr.mxu0 0.0
        %253 = vmatpush1.msra.mxu0 0.0
        %254 = vmatprep.subr.mxu0 0.0
        %255 = vmatpush1.msra.mxu0 0.0
        %256 = vmatprep.subr.mxu0 0.0
        %257 = vmatpush1.msra.mxu0 0.0
        %258 = vmatprep.mubr.f32.mxu0 0.0
        %259 = vmatmul.mubr.f32.gmra.mrb[0].mxu0 %v187
        %v260 = vpop.f32.mrb[0].mxu0
        %v261 = vadd.f32 0.0, %v260
        %v262 = vpop.f32.mrb[0].mxu0
        %v263 = vadd.f32 0.0, %v262
        %264 = vdwg.mxu0
        %v266 = vsel %vm185, %v173, 0
        %v269 = vsel %vm189, %v171, 0
        %v272 = vsel %vm189, %v172, 0
        %274 = vmatprep.subr.mxu0 %v272
        %275 = vmatpush1.msra.mxu0 %v269
        %276 = vmatprep.subr.mxu0 0.0
        %277 = vmatpush1.msra.mxu0 0.0
        %278 = vmatprep.subr.mxu0 0.0
        %279 = vmatpush1.msra.mxu0 0.0
        %280 = vmatprep.subr.mxu0 0.0
        %281 = vmatpush1.msra.mxu0 0.0
        %282 = vmatprep.subr.mxu0 0.0
        %283 = vmatpush1.msra.mxu0 0.0
        %284 = vmatprep.subr.mxu0 0.0
        %285 = vmatpush1.msra.mxu0 0.0
        %286 = vmatprep.subr.mxu0 0.0
        %287 = vmatpush1.msra.mxu0 0.0
        %288 = vmatprep.subr.mxu0 0.0
        %289 = vmatpush1.msra.mxu0 0.0
        %290 = vmatprep.subr.mxu0 0.0
        %291 = vmatpush1.msra.mxu0 0.0
        %292 = vmatprep.subr.mxu0 0.0
        %293 = vmatpush1.msra.mxu0 0.0
        %294 = vmatprep.subr.mxu0 0.0
        %295 = vmatpush1.msra.mxu0 0.0
        %296 = vmatprep.subr.mxu0 0.0
        %297 = vmatpush1.msra.mxu0 0.0
        %298 = vmatprep.subr.mxu0 0.0
        %299 = vmatpush1.msra.mxu0 0.0
        %300 = vmatprep.subr.mxu0 0.0
        %301 = vmatpush1.msra.mxu0 0.0
        %302 = vmatprep.subr.mxu0 0.0
        %303 = vmatpush1.msra.mxu0 0.0
        %304 = vmatprep.subr.mxu0 0.0
        %305 = vmatpush1.msra.mxu0 0.0
        %306 = vmatprep.subr.mxu0 0.0
        %307 = vmatpush1.msra.mxu0 0.0
        %308 = vmatprep.subr.mxu0 0.0
        %309 = vmatpush1.msra.mxu0 0.0
        %310 = vmatprep.subr.mxu0 0.0
        %311 = vmatpush1.msra.mxu0 0.0
        %312 = vmatprep.subr.mxu0 0.0
        %313 = vmatpush1.msra.mxu0 0.0
        %314 = vmatprep.subr.mxu0 0.0
        %315 = vmatpush1.msra.mxu0 0.0
        %316 = vmatprep.subr.mxu0 0.0
        %317 = vmatpush1.msra.mxu0 0.0
        %318 = vmatprep.subr.mxu0 0.0
        %319 = vmatpush1.msra.mxu0 0.0
        %320 = vmatprep.subr.mxu0 0.0
        %321 = vmatpush1.msra.mxu0 0.0
        %322 = vmatprep.subr.mxu0 0.0
        %323 = vmatpush1.msra.mxu0 0.0
        %324 = vmatprep.subr.mxu0 0.0
        %325 = vmatpush1.msra.mxu0 0.0
        %326 = vmatprep.subr.mxu0 0.0
        %327 = vmatpush1.msra.mxu0 0.0
        %328 = vmatprep.subr.mxu0 0.0
        %329 = vmatpush1.msra.mxu0 0.0
        %330 = vmatprep.subr.mxu0 0.0
        %331 = vmatpush1.msra.mxu0 0.0
        %332 = vmatprep.subr.mxu0 0.0
        %333 = vmatpush1.msra.mxu0 0.0
        %334 = vmatprep.subr.mxu0 0.0
        %335 = vmatpush1.msra.mxu0 0.0
        %336 = vmatprep.subr.mxu0 0.0
        %337 = vmatpush1.msra.mxu0 0.0
        %338 = vmatprep.mubr.f32.mxu0 0.0
        %339 = vmatmul.mubr.f32.gmra.mrb[0].mxu0 %v266
        %v340 = vpop.f32.mrb[0].mxu0
        %v341 = vadd.f32 %v261, %v340
        %v342 = vpop.f32.mrb[0].mxu0
        %v343 = vadd.f32 %v263, %v342
        %344 = vdwg.mxu0
        %v345 = vld [vmem:[#allocation2] sm:$0xff]
        %v346 = vld [vmem:[#allocation2 + $0x8] sm:$0xf]
        %v349 = vcombine.high %v345, %v345
        %350 = vrot.lane.b32.xlu0 %v345, 15
        %v351 = vpop.permute.xlu0 %350
        %352 = vrot.lane.b32.xlu0 %v349, 15
        %v353 = vpop.permute.xlu0 %352
        %354 = vrot.lane.b32.xlu0 %v346, 15
        %v355 = vpop.permute.xlu0 %354
        %vm356 = vcmask 121856
        %v357 = vsel %vm356, %v351, %v353
        %v358 = vsel %vm356, %v353, %v355
        %v361 = vsel %vm153, %v357, 0.0
        %v362 = vsel %vm154, %v358, 0.0
        %s363 = scalar_lea.vmem %s1, 16
        %v364 = vld [vmem:[%s363] sm:$0xff]
        %v366 = vsel %vm185, %v364, 0
        %v369 = vsel %vm189, %v361, 0
        %v372 = vsel %vm189, %v362, 0
        %374 = vmatprep.subr.mxu0 %v372
        %375 = vmatpush1.msra.mxu0 %v369
        %376 = vmatprep.subr.mxu0 0.0
        %377 = vmatpush1.msra.mxu0 0.0
        %378 = vmatprep.subr.mxu0 0.0
        %379 = vmatpush1.msra.mxu0 0.0
        %380 = vmatprep.subr.mxu0 0.0
        %381 = vmatpush1.msra.mxu0 0.0
        %382 = vmatprep.subr.mxu0 0.0
        %383 = vmatpush1.msra.mxu0 0.0
        %384 = vmatprep.subr.mxu0 0.0
        %385 = vmatpush1.msra.mxu0 0.0
        %386 = vmatprep.subr.mxu0 0.0
        %387 = vmatpush1.msra.mxu0 0.0
        %388 = vmatprep.subr.mxu0 0.0
        %389 = vmatpush1.msra.mxu0 0.0
        %390 = vmatprep.subr.mxu0 0.0
        %391 = vmatpush1.msra.mxu0 0.0
        %392 = vmatprep.subr.mxu0 0.0
        %393 = vmatpush1.msra.mxu0 0.0
        %394 = vmatprep.subr.mxu0 0.0
        %395 = vmatpush1.msra.mxu0 0.0
        %396 = vmatprep.subr.mxu0 0.0
        %397 = vmatpush1.msra.mxu0 0.0
        %398 = vmatprep.subr.mxu0 0.0
        %399 = vmatpush1.msra.mxu0 0.0
        %400 = vmatprep.subr.mxu0 0.0
        %401 = vmatpush1.msra.mxu0 0.0
        %402 = vmatprep.subr.mxu0 0.0
        %403 = vmatpush1.msra.mxu0 0.0
        %404 = vmatprep.subr.mxu0 0.0
        %405 = vmatpush1.msra.mxu0 0.0
        %406 = vmatprep.subr.mxu0 0.0
        %407 = vmatpush1.msra.mxu0 0.0
        %408 = vmatprep.subr.mxu0 0.0
        %409 = vmatpush1.msra.mxu0 0.0
        %410 = vmatprep.subr.mxu0 0.0
        %411 = vmatpush1.msra.mxu0 0.0
        %412 = vmatprep.subr.mxu0 0.0
        %413 = vmatpush1.msra.mxu0 0.0
        %414 = vmatprep.subr.mxu0 0.0
        %415 = vmatpush1.msra.mxu0 0.0
        %416 = vmatprep.subr.mxu0 0.0
        %417 = vmatpush1.msra.mxu0 0.0
        %418 = vmatprep.subr.mxu0 0.0
        %419 = vmatpush1.msra.mxu0 0.0
        %420 = vmatprep.subr.mxu0 0.0
        %421 = vmatpush1.msra.mxu0 0.0
        %422 = vmatprep.subr.mxu0 0.0
        %423 = vmatpush1.msra.mxu0 0.0
        %424 = vmatprep.subr.mxu0 0.0
        %425 = vmatpush1.msra.mxu0 0.0
        %426 = vmatprep.subr.mxu0 0.0
        %427 = vmatpush1.msra.mxu0 0.0
        %428 = vmatprep.subr.mxu0 0.0
        %429 = vmatpush1.msra.mxu0 0.0
        %430 = vmatprep.subr.mxu0 0.0
        %431 = vmatpush1.msra.mxu0 0.0
        %432 = vmatprep.subr.mxu0 0.0
        %433 = vmatpush1.msra.mxu0 0.0
        %434 = vmatprep.subr.mxu0 0.0
        %435 = vmatpush1.msra.mxu0 0.0
        %436 = vmatprep.subr.mxu0 0.0
        %437 = vmatpush1.msra.mxu0 0.0
        %438 = vmatprep.mubr.f32.mxu0 0.0
        %439 = vmatmul.mubr.f32.gmra.mrb[0].mxu0 %v366
        %v440 = vpop.f32.mrb[0].mxu0
        %v441 = vadd.f32 0.0, %v440
        %v442 = vpop.f32.mrb[0].mxu0
        %v443 = vadd.f32 0.0, %v442
        %444 = vdwg.mxu0
        %v445 = vadd.f32 %v341, %v441
        %v446 = vadd.f32 %v343, %v443
        %v447 = vld [vmem:[#allocation2] sm:$0xff]
        %v448 = vld [vmem:[#allocation2 + $0x8] sm:$0xf]
        %v451 = vcombine.high %v447, %v447
        %452 = vrot.lane.b32.xlu0 %v447, 1
        %v453 = vpop.permute.xlu0 %452
        %454 = vrot.lane.b32.xlu0 %v451, 1
        %v455 = vpop.permute.xlu0 %454
        %456 = vrot.lane.b32.xlu0 %v448, 1
        %v457 = vpop.permute.xlu0 %456
        %vm458 = vcmask 7168
        %v459 = vsel %vm458, %v453, %v455
        %v460 = vsel %vm458, %v455, %v457
        %v463 = vsel %vm151, %v459, 0.0
        %v464 = vsel %vm152, %v460, 0.0
        %s465 = scalar_lea.vmem %s1, 24
        %v466 = vld [vmem:[%s465] sm:$0xff]
        %v468 = vsel %vm185, %v466, 0
        %v471 = vsel %vm189, %v463, 0
        %v474 = vsel %vm189, %v464, 0
        %476 = vmatprep.subr.mxu0 %v474
        %477 = vmatpush1.msra.mxu0 %v471
        %478 = vmatprep.subr.mxu0 0.0
        %479 = vmatpush1.msra.mxu0 0.0
        %480 = vmatprep.subr.mxu0 0.0
        %481 = vmatpush1.msra.mxu0 0.0
        %482 = vmatprep.subr.mxu0 0.0
        %483 = vmatpush1.msra.mxu0 0.0
        %484 = vmatprep.subr.mxu0 0.0
        %485 = vmatpush1.msra.mxu0 0.0
        %486 = vmatprep.subr.mxu0 0.0
        %487 = vmatpush1.msra.mxu0 0.0
        %488 = vmatprep.subr.mxu0 0.0
        %489 = vmatpush1.msra.mxu0 0.0
        %490 = vmatprep.subr.mxu0 0.0
        %491 = vmatpush1.msra.mxu0 0.0
        %492 = vmatprep.subr.mxu0 0.0
        %493 = vmatpush1.msra.mxu0 0.0
        %494 = vmatprep.subr.mxu0 0.0
        %495 = vmatpush1.msra.mxu0 0.0
        %496 = vmatprep.subr.mxu0 0.0
        %497 = vmatpush1.msra.mxu0 0.0
        %498 = vmatprep.subr.mxu0 0.0
        %499 = vmatpush1.msra.mxu0 0.0
        %500 = vmatprep.subr.mxu0 0.0
        %501 = vmatpush1.msra.mxu0 0.0
        %502 = vmatprep.subr.mxu0 0.0
        %503 = vmatpush1.msra.mxu0 0.0
        %504 = vmatprep.subr.mxu0 0.0
        %505 = vmatpush1.msra.mxu0 0.0
        %506 = vmatprep.subr.mxu0 0.0
        %507 = vmatpush1.msra.mxu0 0.0
        %508 = vmatprep.subr.mxu0 0.0
        %509 = vmatpush1.msra.mxu0 0.0
        %510 = vmatprep.subr.mxu0 0.0
        %511 = vmatpush1.msra.mxu0 0.0
        %512 = vmatprep.subr.mxu0 0.0
        %513 = vmatpush1.msra.mxu0 0.0
        %514 = vmatprep.subr.mxu0 0.0
        %515 = vmatpush1.msra.mxu0 0.0
        %516 = vmatprep.subr.mxu0 0.0
        %517 = vmatpush1.msra.mxu0 0.0
        %518 = vmatprep.subr.mxu0 0.0
        %519 = vmatpush1.msra.mxu0 0.0
        %520 = vmatprep.subr.mxu0 0.0
        %521 = vmatpush1.msra.mxu0 0.0
        %522 = vmatprep.subr.mxu0 0.0
        %523 = vmatpush1.msra.mxu0 0.0
        %524 = vmatprep.subr.mxu0 0.0
        %525 = vmatpush1.msra.mxu0 0.0
        %526 = vmatprep.subr.mxu0 0.0
        %527 = vmatpush1.msra.mxu0 0.0
        %528 = vmatprep.subr.mxu0 0.0
        %529 = vmatpush1.msra.mxu0 0.0
        %530 = vmatprep.subr.mxu0 0.0
        %531 = vmatpush1.msra.mxu0 0.0
        %532 = vmatprep.subr.mxu0 0.0
        %533 = vmatpush1.msra.mxu0 0.0
        %534 = vmatprep.subr.mxu0 0.0
        %535 = vmatpush1.msra.mxu0 0.0
        %536 = vmatprep.subr.mxu0 0.0
        %537 = vmatpush1.msra.mxu0 0.0
        %538 = vmatprep.subr.mxu0 0.0
        %539 = vmatpush1.msra.mxu0 0.0
        %540 = vmatprep.mubr.f32.mxu0 0.0
        %541 = vmatmul.mubr.f32.gmra.mrb[0].mxu0 %v468
        %v542 = vpop.f32.mrb[0].mxu0
        %v543 = vadd.f32 0.0, %v542
        %v544 = vpop.f32.mrb[0].mxu0
        %v545 = vadd.f32 0.0, %v544
        %546 = vdwg.mxu0
        %v547 = vadd.f32 %v445, %v543
        %v548 = vadd.f32 %v446, %v545
        %v549 = vld [vmem:[#allocation2 + $0x4] sm:$0xff]
        %s550 = scalar_lea.vmem %s1, 32
        %v551 = vld [vmem:[%s550] sm:$0xff]
        %v553 = vcombine.high %v549, %v549
        %v555 = vsel %vm185, %v551, 0
        %v557 = vsel %vm189, %v549, 0
        %v559 = vsel %vm189, %v553, 0
        %561 = vmatprep.subr.mxu0 %v559
        %562 = vmatpush1.msra.mxu0 %v557
        %563 = vmatprep.subr.mxu0 0.0
        %564 = vmatpush1.msra.mxu0 0.0
        %565 = vmatprep.subr.mxu0 0.0
        %566 = vmatpush1.msra.mxu0 0.0
        %567 = vmatprep.subr.mxu0 0.0
        %568 = vmatpush1.msra.mxu0 0.0
        %569 = vmatprep.subr.mxu0 0.0
        %570 = vmatpush1.msra.mxu0 0.0
        %571 = vmatprep.subr.mxu0 0.0
        %572 = vmatpush1.msra.mxu0 0.0
        %573 = vmatprep.subr.mxu0 0.0
        %574 = vmatpush1.msra.mxu0 0.0
        %575 = vmatprep.subr.mxu0 0.0
        %576 = vmatpush1.msra.mxu0 0.0
        %577 = vmatprep.subr.mxu0 0.0
        %578 = vmatpush1.msra.mxu0 0.0
        %579 = vmatprep.subr.mxu0 0.0
        %580 = vmatpush1.msra.mxu0 0.0
        %581 = vmatprep.subr.mxu0 0.0
        %582 = vmatpush1.msra.mxu0 0.0
        %583 = vmatprep.subr.mxu0 0.0
        %584 = vmatpush1.msra.mxu0 0.0
        %585 = vmatprep.subr.mxu0 0.0
        %586 = vmatpush1.msra.mxu0 0.0
        %587 = vmatprep.subr.mxu0 0.0
        %588 = vmatpush1.msra.mxu0 0.0
        %589 = vmatprep.subr.mxu0 0.0
        %590 = vmatpush1.msra.mxu0 0.0
        %591 = vmatprep.subr.mxu0 0.0
        %592 = vmatpush1.msra.mxu0 0.0
        %593 = vmatprep.subr.mxu0 0.0
        %594 = vmatpush1.msra.mxu0 0.0
        %595 = vmatprep.subr.mxu0 0.0
        %596 = vmatpush1.msra.mxu0 0.0
        %597 = vmatprep.subr.mxu0 0.0
        %598 = vmatpush1.msra.mxu0 0.0
        %599 = vmatprep.subr.mxu0 0.0
        %600 = vmatpush1.msra.mxu0 0.0
        %601 = vmatprep.subr.mxu0 0.0
        %602 = vmatpush1.msra.mxu0 0.0
        %603 = vmatprep.subr.mxu0 0.0
        %604 = vmatpush1.msra.mxu0 0.0
        %605 = vmatprep.subr.mxu0 0.0
        %606 = vmatpush1.msra.mxu0 0.0
        %607 = vmatprep.subr.mxu0 0.0
        %608 = vmatpush1.msra.mxu0 0.0
        %609 = vmatprep.subr.mxu0 0.0
        %610 = vmatpush1.msra.mxu0 0.0
        %611 = vmatprep.subr.mxu0 0.0
        %612 = vmatpush1.msra.mxu0 0.0
        %613 = vmatprep.subr.mxu0 0.0
        %614 = vmatpush1.msra.mxu0 0.0
        %615 = vmatprep.subr.mxu0 0.0
        %616 = vmatpush1.msra.mxu0 0.0
        %617 = vmatprep.subr.mxu0 0.0
        %618 = vmatpush1.msra.mxu0 0.0
        %619 = vmatprep.subr.mxu0 0.0
        %620 = vmatpush1.msra.mxu0 0.0
        %621 = vmatprep.subr.mxu0 0.0
        %622 = vmatpush1.msra.mxu0 0.0
        %623 = vmatprep.subr.mxu0 0.0
        %624 = vmatpush1.msra.mxu0 0.0
        %625 = vmatprep.mubr.f32.mxu0 0.0
        %626 = vmatmul.mubr.f32.gmra.mrb[0].mxu0 %v555
        %v627 = vpop.f32.mrb[0].mxu0
        %v628 = vadd.f32 0.0, %v627
        %v629 = vpop.f32.mrb[0].mxu0
        %v630 = vadd.f32 0.0, %v629
        %631 = vdwg.mxu0
        %v632 = vadd.f32 %v547, %v628
        %v633 = vadd.f32 %v548, %v630
        %v634 = vld [vmem:[#allocation2 + $0x4] sm:$0xff]
        %v635 = vld [vmem:[#allocation2 + $0xc] sm:$0xf]
        %v638 = vcombine.high %v634, %v634
        %639 = vrot.lane.b32.xlu0 %v634, 127
        %v640 = vpop.permute.xlu0 %639
        %641 = vrot.lane.b32.xlu0 %v638, 127
        %v642 = vpop.permute.xlu0 %641
        %643 = vrot.lane.b32.xlu0 %v635, 127
        %v644 = vpop.permute.xlu0 %643
        %vm645 = vcmask 1039360
        %v646 = vsel %vm645, %v640, %v642
        %v647 = vsel %vm645, %v642, %v644
        %v650 = vsel %vm153, %v646, 0.0
        %v651 = vsel %vm154, %v647, 0.0
        %s652 = scalar_lea.vmem %s1, 40
        %v653 = vld [vmem:[%s652] sm:$0xff]
        %v655 = vsel %vm185, %v653, 0
        %v658 = vsel %vm189, %v650, 0
        %v661 = vsel %vm189, %v651, 0
        %663 = vmatprep.subr.mxu0 %v661
        %664 = vmatpush1.msra.mxu0 %v658
        %665 = vmatprep.subr.mxu0 0.0
        %666 = vmatpush1.msra.mxu0 0.0
        %667 = vmatprep.subr.mxu0 0.0
        %668 = vmatpush1.msra.mxu0 0.0
        %669 = vmatprep.subr.mxu0 0.0
        %670 = vmatpush1.msra.mxu0 0.0
        %671 = vmatprep.subr.mxu0 0.0
        %672 = vmatpush1.msra.mxu0 0.0
        %673 = vmatprep.subr.mxu0 0.0
        %674 = vmatpush1.msra.mxu0 0.0
        %675 = vmatprep.subr.mxu0 0.0
        %676 = vmatpush1.msra.mxu0 0.0
        %677 = vmatprep.subr.mxu0 0.0
        %678 = vmatpush1.msra.mxu0 0.0
        %679 = vmatprep.subr.mxu0 0.0
        %680 = vmatpush1.msra.mxu0 0.0
        %681 = vmatprep.subr.mxu0 0.0
        %682 = vmatpush1.msra.mxu0 0.0
        %683 = vmatprep.subr.mxu0 0.0
        %684 = vmatpush1.msra.mxu0 0.0
        %685 = vmatprep.subr.mxu0 0.0
        %686 = vmatpush1.msra.mxu0 0.0
        %687 = vmatprep.subr.mxu0 0.0
        %688 = vmatpush1.msra.mxu0 0.0
        %689 = vmatprep.subr.mxu0 0.0
        %690 = vmatpush1.msra.mxu0 0.0
        %691 = vmatprep.subr.mxu0 0.0
        %692 = vmatpush1.msra.mxu0 0.0
        %693 = vmatprep.subr.mxu0 0.0
        %694 = vmatpush1.msra.mxu0 0.0
        %695 = vmatprep.subr.mxu0 0.0
        %696 = vmatpush1.msra.mxu0 0.0
        %697 = vmatprep.subr.mxu0 0.0
        %698 = vmatpush1.msra.mxu0 0.0
        %699 = vmatprep.subr.mxu0 0.0
        %700 = vmatpush1.msra.mxu0 0.0
        %701 = vmatprep.subr.mxu0 0.0
        %702 = vmatpush1.msra.mxu0 0.0
        %703 = vmatprep.subr.mxu0 0.0
        %704 = vmatpush1.msra.mxu0 0.0
        %705 = vmatprep.subr.mxu0 0.0
        %706 = vmatpush1.msra.mxu0 0.0
        %707 = vmatprep.subr.mxu0 0.0
        %708 = vmatpush1.msra.mxu0 0.0
        %709 = vmatprep.subr.mxu0 0.0
        %710 = vmatpush1.msra.mxu0 0.0
        %711 = vmatprep.subr.mxu0 0.0
        %712 = vmatpush1.msra.mxu0 0.0
        %713 = vmatprep.subr.mxu0 0.0
        %714 = vmatpush1.msra.mxu0 0.0
        %715 = vmatprep.subr.mxu0 0.0
        %716 = vmatpush1.msra.mxu0 0.0
        %717 = vmatprep.subr.mxu0 0.0
        %718 = vmatpush1.msra.mxu0 0.0
        %719 = vmatprep.subr.mxu0 0.0
        %720 = vmatpush1.msra.mxu0 0.0
        %721 = vmatprep.subr.mxu0 0.0
        %722 = vmatpush1.msra.mxu0 0.0
        %723 = vmatprep.subr.mxu0 0.0
        %724 = vmatpush1.msra.mxu0 0.0
        %725 = vmatprep.subr.mxu0 0.0
        %726 = vmatpush1.msra.mxu0 0.0
        %727 = vmatprep.mubr.f32.mxu0 0.0
        %728 = vmatmul.mubr.f32.gmra.mrb[0].mxu0 %v655
        %v729 = vpop.f32.mrb[0].mxu0
        %v730 = vadd.f32 0.0, %v729
        %v731 = vpop.f32.mrb[0].mxu0
        %v732 = vadd.f32 0.0, %v731
        %733 = vdwg.mxu0
        %v734 = vadd.f32 %v632, %v730
        %v735 = vadd.f32 %v633, %v732
        %v736 = vld [vmem:[#allocation2 + $0x4] sm:$0xff]
        %v737 = vld [vmem:[#allocation2 + $0xc] sm:$0xf]
        %v740 = vcombine.high %v736, %v736
        %741 = vrot.lane.b32.xlu0 %v736, 113
        %v742 = vpop.permute.xlu0 %741
        %743 = vrot.lane.b32.xlu0 %v740, 113
        %v744 = vpop.permute.xlu0 %743
        %745 = vrot.lane.b32.xlu0 %v737, 113
        %v746 = vpop.permute.xlu0 %745
        %vm747 = vcmask 924672
        %v748 = vsel %vm747, %v742, %v744
        %v749 = vsel %vm747, %v744, %v746
        %v752 = vsel %vm151, %v748, 0.0
        %v753 = vsel %vm152, %v749, 0.0
        %s754 = scalar_lea.vmem %s1, 48
        %v755 = vld [vmem:[%s754] sm:$0xff]
        %v757 = vsel %vm185, %v755, 0
        %v760 = vsel %vm189, %v752, 0
        %v763 = vsel %vm189, %v753, 0
        %765 = vmatprep.subr.mxu0 %v763
        %766 = vmatpush1.msra.mxu0 %v760
        %767 = vmatprep.subr.mxu0 0.0
        %768 = vmatpush1.msra.mxu0 0.0
        %769 = vmatprep.subr.mxu0 0.0
        %770 = vmatpush1.msra.mxu0 0.0
        %771 = vmatprep.subr.mxu0 0.0
        %772 = vmatpush1.msra.mxu0 0.0
        %773 = vmatprep.subr.mxu0 0.0
        %774 = vmatpush1.msra.mxu0 0.0
        %775 = vmatprep.subr.mxu0 0.0
        %776 = vmatpush1.msra.mxu0 0.0
        %777 = vmatprep.subr.mxu0 0.0
        %778 = vmatpush1.msra.mxu0 0.0
        %779 = vmatprep.subr.mxu0 0.0
        %780 = vmatpush1.msra.mxu0 0.0
        %781 = vmatprep.subr.mxu0 0.0
        %782 = vmatpush1.msra.mxu0 0.0
        %783 = vmatprep.subr.mxu0 0.0
        %784 = vmatpush1.msra.mxu0 0.0
        %785 = vmatprep.subr.mxu0 0.0
        %786 = vmatpush1.msra.mxu0 0.0
        %787 = vmatprep.subr.mxu0 0.0
        %788 = vmatpush1.msra.mxu0 0.0
        %789 = vmatprep.subr.mxu0 0.0
        %790 = vmatpush1.msra.mxu0 0.0
        %791 = vmatprep.subr.mxu0 0.0
        %792 = vmatpush1.msra.mxu0 0.0
        %793 = vmatprep.subr.mxu0 0.0
        %794 = vmatpush1.msra.mxu0 0.0
        %795 = vmatprep.subr.mxu0 0.0
        %796 = vmatpush1.msra.mxu0 0.0
        %797 = vmatprep.subr.mxu0 0.0
        %798 = vmatpush1.msra.mxu0 0.0
        %799 = vmatprep.subr.mxu0 0.0
        %800 = vmatpush1.msra.mxu0 0.0
        %801 = vmatprep.subr.mxu0 0.0
        %802 = vmatpush1.msra.mxu0 0.0
        %803 = vmatprep.subr.mxu0 0.0
        %804 = vmatpush1.msra.mxu0 0.0
        %805 = vmatprep.subr.mxu0 0.0
        %806 = vmatpush1.msra.mxu0 0.0
        %807 = vmatprep.subr.mxu0 0.0
        %808 = vmatpush1.msra.mxu0 0.0
        %809 = vmatprep.subr.mxu0 0.0
        %810 = vmatpush1.msra.mxu0 0.0
        %811 = vmatprep.subr.mxu0 0.0
        %812 = vmatpush1.msra.mxu0 0.0
        %813 = vmatprep.subr.mxu0 0.0
        %814 = vmatpush1.msra.mxu0 0.0
        %815 = vmatprep.subr.mxu0 0.0
        %816 = vmatpush1.msra.mxu0 0.0
        %817 = vmatprep.subr.mxu0 0.0
        %818 = vmatpush1.msra.mxu0 0.0
        %819 = vmatprep.subr.mxu0 0.0
        %820 = vmatpush1.msra.mxu0 0.0
        %821 = vmatprep.subr.mxu0 0.0
        %822 = vmatpush1.msra.mxu0 0.0
        %823 = vmatprep.subr.mxu0 0.0
        %824 = vmatpush1.msra.mxu0 0.0
        %825 = vmatprep.subr.mxu0 0.0
        %826 = vmatpush1.msra.mxu0 0.0
        %827 = vmatprep.subr.mxu0 0.0
        %828 = vmatpush1.msra.mxu0 0.0
        %829 = vmatprep.mubr.f32.mxu0 0.0
        %830 = vmatmul.mubr.f32.gmra.mrb[0].mxu0 %v757
        %v831 = vpop.f32.mrb[0].mxu0
        %v832 = vadd.f32 0.0, %v831
        %v833 = vpop.f32.mrb[0].mxu0
        %v834 = vadd.f32 0.0, %v833
        %835 = vdwg.mxu0
        %v836 = vadd.f32 %v734, %v832
        %v837 = vadd.f32 %v735, %v834
        %v838 = vld [vmem:[#allocation2 + $0x4] sm:$0xff]
        %v839 = vld [vmem:[#allocation2 + $0xc] sm:$0xf]
        %s840 = scalar_lea.vmem %s1, 56
        %v841 = vld [vmem:[%s840] sm:$0xff]
        %v844 = vcombine.high %v838, %v838
        %845 = vrot.lane.b32.xlu0 %v838, 112
        %v846 = vpop.permute.xlu0 %845
        %847 = vrot.lane.b32.xlu0 %v844, 112
        %v848 = vpop.permute.xlu0 %847
        %849 = vrot.lane.b32.xlu0 %v839, 112
        %v850 = vpop.permute.xlu0 %849
        %vm851 = vcmask 916480
        %v852 = vsel %vm851, %v846, %v848
        %v853 = vsel %vm851, %v848, %v850
        %v855 = vsel %vm185, %v841, 0
        %v857 = vsel %vm189, %v852, 0
        %v859 = vsel %vm189, %v853, 0
        %861 = vmatprep.subr.mxu0 %v859
        %862 = vmatpush1.msra.mxu0 %v857
        %863 = vmatprep.subr.mxu0 0.0
        %864 = vmatpush1.msra.mxu0 0.0
        %865 = vmatprep.subr.mxu0 0.0
        %866 = vmatpush1.msra.mxu0 0.0
        %867 = vmatprep.subr.mxu0 0.0
        %868 = vmatpush1.msra.mxu0 0.0
        %869 = vmatprep.subr.mxu0 0.0
        %870 = vmatpush1.msra.mxu0 0.0
        %871 = vmatprep.subr.mxu0 0.0
        %872 = vmatpush1.msra.mxu0 0.0
        %873 = vmatprep.subr.mxu0 0.0
        %874 = vmatpush1.msra.mxu0 0.0
        %875 = vmatprep.subr.mxu0 0.0
        %876 = vmatpush1.msra.mxu0 0.0
        %877 = vmatprep.subr.mxu0 0.0
        %878 = vmatpush1.msra.mxu0 0.0
        %879 = vmatprep.subr.mxu0 0.0
        %880 = vmatpush1.msra.mxu0 0.0
        %881 = vmatprep.subr.mxu0 0.0
        %882 = vmatpush1.msra.mxu0 0.0
        %883 = vmatprep.subr.mxu0 0.0
        %884 = vmatpush1.msra.mxu0 0.0
        %885 = vmatprep.subr.mxu0 0.0
        %886 = vmatpush1.msra.mxu0 0.0
        %887 = vmatprep.subr.mxu0 0.0
        %888 = vmatpush1.msra.mxu0 0.0
        %889 = vmatprep.subr.mxu0 0.0
        %890 = vmatpush1.msra.mxu0 0.0
        %891 = vmatprep.subr.mxu0 0.0
        %892 = vmatpush1.msra.mxu0 0.0
        %893 = vmatprep.subr.mxu0 0.0
        %894 = vmatpush1.msra.mxu0 0.0
        %895 = vmatprep.subr.mxu0 0.0
        %896 = vmatpush1.msra.mxu0 0.0
        %897 = vmatprep.subr.mxu0 0.0
        %898 = vmatpush1.msra.mxu0 0.0
        %899 = vmatprep.subr.mxu0 0.0
        %900 = vmatpush1.msra.mxu0 0.0
        %901 = vmatprep.subr.mxu0 0.0
        %902 = vmatpush1.msra.mxu0 0.0
        %903 = vmatprep.subr.mxu0 0.0
        %904 = vmatpush1.msra.mxu0 0.0
        %905 = vmatprep.subr.mxu0 0.0
        %906 = vmatpush1.msra.mxu0 0.0
        %907 = vmatprep.subr.mxu0 0.0
        %908 = vmatpush1.msra.mxu0 0.0
        %909 = vmatprep.subr.mxu0 0.0
        %910 = vmatpush1.msra.mxu0 0.0
        %911 = vmatprep.subr.mxu0 0.0
        %912 = vmatpush1.msra.mxu0 0.0
        %913 = vmatprep.subr.mxu0 0.0
        %914 = vmatpush1.msra.mxu0 0.0
        %915 = vmatprep.subr.mxu0 0.0
        %916 = vmatpush1.msra.mxu0 0.0
        %917 = vmatprep.subr.mxu0 0.0
        %918 = vmatpush1.msra.mxu0 0.0
        %919 = vmatprep.subr.mxu0 0.0
        %920 = vmatpush1.msra.mxu0 0.0
        %921 = vmatprep.subr.mxu0 0.0
        %922 = vmatpush1.msra.mxu0 0.0
        %923 = vmatprep.subr.mxu0 0.0
        %924 = vmatpush1.msra.mxu0 0.0
        %925 = vmatprep.mubr.f32.mxu0 0.0
        %926 = vmatmul.mubr.f32.gmra.mrb[0].mxu0 %v855
        %v927 = vpop.f32.mrb[0].mxu0
        %v928 = vadd.f32 0.0, %v927
        %v929 = vpop.f32.mrb[0].mxu0
        %v930 = vadd.f32 0.0, %v929
        %931 = vdwg.mxu0
        %v932 = vadd.f32 %v836, %v928
        %v933 = vadd.f32 %v837, %v930
        %v934 = vld [vmem:[#allocation2 + $0x4] sm:$0xff]
        %v935 = vld [vmem:[#allocation2 + $0xc] sm:$0xf]
        %v938 = vcombine.high %v934, %v934
        %939 = vrot.lane.b32.xlu0 %v934, 111
        %v940 = vpop.permute.xlu0 %939
        %941 = vrot.lane.b32.xlu0 %v938, 111
        %v942 = vpop.permute.xlu0 %941
        %943 = vrot.lane.b32.xlu0 %v935, 111
        %v944 = vpop.permute.xlu0 %943
        %vm945 = vcmask 908288
        %v946 = vsel %vm945, %v940, %v942
        %v947 = vsel %vm945, %v942, %v944
        %v950 = vsel %vm153, %v946, 0.0
        %v951 = vsel %vm154, %v947, 0.0
        %s952 = scalar_lea.vmem %s1, 64
        %v953 = vld [vmem:[%s952] sm:$0xff]
        %v955 = vsel %vm185, %v953, 0
        %v958 = vsel %vm189, %v950, 0
        %v961 = vsel %vm189, %v951, 0
        %963 = vmatprep.subr.mxu0 %v961
        %964 = vmatpush1.msra.mxu0 %v958
        %965 = vmatprep.subr.mxu0 0.0
        %966 = vmatpush1.msra.mxu0 0.0
        %967 = vmatprep.subr.mxu0 0.0
        %968 = vmatpush1.msra.mxu0 0.0
        %969 = vmatprep.subr.mxu0 0.0
        %970 = vmatpush1.msra.mxu0 0.0
        %971 = vmatprep.subr.mxu0 0.0
        %972 = vmatpush1.msra.mxu0 0.0
        %973 = vmatprep.subr.mxu0 0.0
        %974 = vmatpush1.msra.mxu0 0.0
        %975 = vmatprep.subr.mxu0 0.0
        %976 = vmatpush1.msra.mxu0 0.0
        %977 = vmatprep.subr.mxu0 0.0
        %978 = vmatpush1.msra.mxu0 0.0
        %979 = vmatprep.subr.mxu0 0.0
        %980 = vmatpush1.msra.mxu0 0.0
        %981 = vmatprep.subr.mxu0 0.0
        %982 = vmatpush1.msra.mxu0 0.0
        %983 = vmatprep.subr.mxu0 0.0
        %984 = vmatpush1.msra.mxu0 0.0
        %985 = vmatprep.subr.mxu0 0.0
        %986 = vmatpush1.msra.mxu0 0.0
        %987 = vmatprep.subr.mxu0 0.0
        %988 = vmatpush1.msra.mxu0 0.0
        %989 = vmatprep.subr.mxu0 0.0
        %990 = vmatpush1.msra.mxu0 0.0
        %991 = vmatprep.subr.mxu0 0.0
        %992 = vmatpush1.msra.mxu0 0.0
        %993 = vmatprep.subr.mxu0 0.0
        %994 = vmatpush1.msra.mxu0 0.0
        %995 = vmatprep.subr.mxu0 0.0
        %996 = vmatpush1.msra.mxu0 0.0
        %997 = vmatprep.subr.mxu0 0.0
        %998 = vmatpush1.msra.mxu0 0.0
        %999 = vmatprep.subr.mxu0 0.0
        %1000 = vmatpush1.msra.mxu0 0.0
        %1001 = vmatprep.subr.mxu0 0.0
        %1002 = vmatpush1.msra.mxu0 0.0
        %1003 = vmatprep.subr.mxu0 0.0
        %1004 = vmatpush1.msra.mxu0 0.0
        %1005 = vmatprep.subr.mxu0 0.0
        %1006 = vmatpush1.msra.mxu0 0.0
        %1007 = vmatprep.subr.mxu0 0.0
        %1008 = vmatpush1.msra.mxu0 0.0
        %1009 = vmatprep.subr.mxu0 0.0
        %1010 = vmatpush1.msra.mxu0 0.0
        %1011 = vmatprep.subr.mxu0 0.0
        %1012 = vmatpush1.msra.mxu0 0.0
        %1013 = vmatprep.subr.mxu0 0.0
        %1014 = vmatpush1.msra.mxu0 0.0
        %1015 = vmatprep.subr.mxu0 0.0
        %1016 = vmatpush1.msra.mxu0 0.0
        %1017 = vmatprep.subr.mxu0 0.0
        %1018 = vmatpush1.msra.mxu0 0.0
        %1019 = vmatprep.subr.mxu0 0.0
        %1020 = vmatpush1.msra.mxu0 0.0
        %1021 = vmatprep.subr.mxu0 0.0
        %1022 = vmatpush1.msra.mxu0 0.0
        %1023 = vmatprep.subr.mxu0 0.0
        %1024 = vmatpush1.msra.mxu0 0.0
        %1025 = vmatprep.subr.mxu0 0.0
        %1026 = vmatpush1.msra.mxu0 0.0
        %1027 = vmatprep.mubr.f32.mxu0 0.0
        %1028 = vmatmul.mubr.f32.gmra.mrb[0].mxu0 %v955
        %v1029 = vpop.f32.mrb[0].mxu0
        %v1030 = vadd.f32 0.0, %v1029
        %v1031 = vpop.f32.mrb[0].mxu0
        %v1032 = vadd.f32 0.0, %v1031
        %1033 = vdwg.mxu0
        %v1034 = vadd.f32 %v932, %v1030
        %v1035 = vadd.f32 %v933, %v1032
        %1036 = vst [vmem:[%s136] sm:$0xff] %v1034
        %1037 = vst [vmem:[%s136 + $0x8] sm:$0xff] %v1035
        %s1038 = sand.u32 %s71, 1
        %s1039 = scalar_lea.sflag [#allocation4], %s1038
        %s1040 = sand.u32 %s71, 1
        %s1041 = smul.addr %s1040, 16
        %s1042 = scalar_lea.vmem [#allocation3], %s1041
        // Predicated region
        $region29: #{tpu_custom_call.1} parent=27 // pred_check
          %p1043 = pneg %p81
        $region30: #{tpu_custom_call.1} parent=27 // pred_check_branch
          %1045 = sbr.rel (%p1043) target = $region32
        $region31: #{tpu_custom_call.1} parent=27 // pred_region
          %s1047 = ssub.s32 256, 256
          %1048 = vsyncadd %s1039, %s1047
          %s1049 = smul.addr %s16, 2
          %s1050 = smul.addr %s1049, 128
          %s1051 = scalar_lea.hbm %s2, %s1050
          %s1053 = sshll.u32 %s1042, 4
          %s1054 = int_to_ptr.vmem [resolvable:$true] %s1053
          %1056 = dma.vmem_to_hbm [thread:$0]  %s1054, 256, %s1051, %s1039
        $region32: #{tpu_custom_call.1} parent=27 // pred_fallthru
          _
      $region28: #{tpu_custom_call.1} parent=5 // pred_fallthru
        _
      %p1057 = scmp.le.s32.totalorder 2, %s11
      // Predicated region
      $region33: #{tpu_custom_call.1} parent=5 // pred_check
        %p1058 = pneg %p1057
      $region34: #{tpu_custom_call.1} parent=5 // pred_check_branch
        %1060 = sbr.rel (%p1058) target = $region36
      $region35: #{tpu_custom_call.1} parent=5 // pred_region
        %s1061 = ssub.s32 %s11, 2
        // Predicated region
        $region37: #{tpu_custom_call.1} parent=35 // pred_check
          %p1062 = pneg %p87
        $region38: #{tpu_custom_call.1} parent=35 // pred_check_branch
          %1064 = sbr.rel (%p1062) target = $region40
        $region39: #{tpu_custom_call.1} parent=35 // pred_region
          %s1065 = sand.u32 %s72, 1
          %s1066 = scalar_lea.sflag [#allocation4], %s1065
          %s1067 = sand.u32 %s72, 1
          %s1068 = smul.addr %s1067, 16
          %s1069 = scalar_lea.vmem [#allocation3], %s1068
          %1070 = dma.done %s1066, 256
        $region40: #{tpu_custom_call.1} parent=35 // pred_fallthru
          _
      $region36: #{tpu_custom_call.1} parent=5 // pred_fallthru
        _
    $region6: #{tpu_custom_call.1} parent=1 // loop_footer
      %s15 = sadd.s32 1, %s11
    $region7: #{tpu_custom_call.1} parent=1 // loop_footer_branch
      %10 = sbr.rel target = $region3
    $region8: #{tpu_custom_call.1} parent=1 // loop_exit
      _
    %1071 = vsyncpa [#allocation4], 1
    %s1072 = scalar_lea.sflag [#allocation4], 1
    %1073 = vsyncpa %s1072, 1

</llo_original>
